<compile_context>
chip_gen: v5e
topology: v5e:2x2
jax: 0.10.0
libtpu: 0.0.40
codegen_flags: <defaults>
</compile_context>

<pallas_src>
import functools
from typing import NamedTuple

import jax
import jax.numpy as jnp
from jax.experimental import pallas as pl
from jax.experimental.pallas import tpu as pltpu


def _round_up(x, m):
    return (x + m - 1) // m * m


def _default_elementwise_dtype():
    """bf16 elementwise chain on v6e/v7x; f32 on v5e and older (no bf16 VPU)."""
    try:
        kind = jax.devices()[0].device_kind.lower()
    except Exception:
        return jnp.float32
    for tag in ("v2", "v3", "v4", "v5"):
        if tag in kind:
            return jnp.float32
    return jnp.bfloat16


class StyleNetworkParams(NamedTuple):
    w: jax.Array        # (depth, D_pad, D_pad) pre-transposed, MXU dtype (bf16)
    b: jax.Array        # (depth, 1, D_pad) elementwise dtype
    dim: int
    dim_pad: int
    depth: int


def prepare_style_network_params(weights, biases, *, mxu_dtype=jnp.bfloat16,
                                 elementwise_dtype=None, lane=128):
    """One-time parameter prep.  Call at load time, NOT per forward."""
    if elementwise_dtype is None:
        elementwise_dtype = _default_elementwise_dtype()
    depth = len(weights)
    assert depth >= 1 and len(biases) == depth
    dim = int(weights[0].shape[1])
    for w, b in zip(weights, biases):
        if tuple(w.shape) != (dim, dim) or tuple(b.shape) != (dim,):
            # TODO(synk): text_latent path (dim_text_latent > 0) unsupported;
            # the reference module's repeated Linear(dim+dim_text_latent, dim)
            # is only shape-consistent for depth == 1 anyway.
            raise NotImplementedError(
                "kernel assumes uniform Linear(dim, dim) layers "
                "(dim_text_latent == 0)")
    dim_pad = _round_up(dim, lane)
    pad = dim_pad - dim
    # Pre-transpose for x @ W^T; zero-pad the feature dim to a lane multiple
    # (padded input cols are zero, padded output cols stay zero through
    # LeakyReLU, so values are unchanged and stores stay lane-dense).
    w_t = jnp.stack([jnp.pad(w.T.astype(jnp.float32), ((0, pad), (0, pad)))
                     for w in weights]).astype(mxu_dtype)
    b_s = jnp.stack([jnp.pad(b.astype(jnp.float32), (0, pad)).reshape(1, dim_pad)
                     for b in biases]).astype(elementwise_dtype)
    return StyleNetworkParams(w_t, b_s, dim, dim_pad, depth)


def _style_network_kernel(x_ref, w_ref, b_ref, o_ref, h_ref, *,
                          layers_per_step, neg_slope, eps,
                          torch_exact_mix, frac_gradient):
    """Grid = (batch_tiles, layer_blocks).

    x_ref : (TB, Dp)                    input latents (f32), same block per l
    w_ref : (layers_per_step, Dp, Dp)   pre-transposed weights (bf16)
    b_ref : (layers_per_step, 1, Dp)    biases (elementwise dtype)
    o_ref : (TB, Dp)                    output tile (f32), written at last l
    h_ref : (TB, Dp)                    activation carry (VMEM scratch)
    """
    l = pl.program_id(1)

    # Layer-block 0: F.normalize(x, dim=1) == L2-normalize the feature dim.
    @pl.when(l == 0)
    def _():
        x = x_ref[...].astype(jnp.float32)
        ss = jnp.sum(x * x, axis=-1, keepdims=True)            # (TB, 1)
        inv = jax.lax.rsqrt(jnp.maximum(ss, eps * eps))         # == 1/max(||x||, eps)
        h_ref[...] = (x * inv).astype(h_ref.dtype)

    h = h_ref[...]
    for j in range(layers_per_step):                             # static unroll
        y = jnp.dot(h.astype(w_ref.dtype), w_ref[j],
                    preferred_element_type=jnp.float32)          # MXU, f32 acc
        y = y.astype(h_ref.dtype) + b_ref[j]                     # bias add
        h = jnp.where(y >= 0, y, neg_slope * y)                  # LeakyReLU
    h_ref[...] = h

    @pl.when(l == pl.num_programs(1) - 1)
    def _():
        out = h.astype(jnp.float32)
        if torch_exact_mix:
            # Bit-exact torch arithmetic of out*f + (1-f)*out.detach().
            out = out * frac_gradient + (1.0 - frac_gradient) * out
        o_ref[...] = out.astype(o_ref.dtype)


def style_network_forward(x, params, *, frac_gradient=0.1, neg_slope=0.2,
                          eps=1e-12, block_b=None,
                          weight_vmem_budget_bytes=20 * 1024 * 1024,
                          torch_exact_mix=False):
    """Fused StyleNetwork forward.  x: (B, dim) f32, params from prepare_*()."""
    if x.ndim != 2 or x.shape[1] != params.dim:
        raise ValueError(f"expected x of shape (B, {params.dim}), got {x.shape}")

    B = x.shape[0]
    D_pad, depth = params.dim_pad, params.depth
    ew_dtype = params.b.dtype
    ew_bytes = ew_dtype.itemsize
    w_bytes_per_layer = D_pad * D_pad * params.w.dtype.itemsize

    # Batch tile: fill the MXU M dimension; keep >= 2 tiles so both v7x TCs
    # get work at mid-size batches.  Tiny batches are latency-bound anyway
    # (batch multiple latent sets into one call if possible).
    if block_b is None:
        if B >= 512:
            block_b = 256
        elif B >= 256:
            block_b = 128
        else:
            block_b = _round_up(B, 8)
    block_b = _round_up(block_b, 8)
    B_pad = _round_up(B, block_b)
    n_btiles = B_pad // block_b

    # Resident vs streamed weights (bounds VMEM on v5e/v7x).
    if 2 * depth * w_bytes_per_layer <= weight_vmem_budget_bytes:
        layers_per_step = depth          # whole stack resident, fetched once
    else:
        layers_per_step = 1              # stream one layer per grid step
    n_ltiles = depth // layers_per_step

    # Pad x (zero rows/cols are harmless: sliced off / contribute nothing).
    x = x.astype(jnp.float32)
    if (B_pad, D_pad) != x.shape:
        x = jnp.pad(x, ((0, B_pad - B), (0, D_pad - x.shape[1])))

    # Explicit VMEM budget: 2 pipeline buffers per operand + scratch + margin.
    vmem_needed = (2 * layers_per_step * w_bytes_per_layer            # weights
                   + 2 * layers_per_step * D_pad * ew_bytes           # biases
                   + 2 * 2 * block_b * D_pad * 4                      # x + out
                   + block_b * D_pad * ew_bytes)                      # h scratch
    vmem_limit = int(min(64 * 2**20, max(32 * 2**20, vmem_needed * 5 // 4)))

    cost = pl.CostEstimate(
        flops=2 * B_pad * D_pad * D_pad * depth,
        transcendentals=B_pad,
        bytes_accessed=(2 * B_pad * D_pad * 4
                        + (n_btiles if n_ltiles > 1 else 1)
                        * depth * w_bytes_per_layer))

    kernel = functools.partial(
        _style_network_kernel,
        layers_per_step=layers_per_step,
        neg_slope=float(neg_slope),
        eps=float(eps),
        torch_exact_mix=bool(torch_exact_mix),
        frac_gradient=float(frac_gradient))

    out = pl.pallas_call(
        kernel,
        out_shape=jax.ShapeDtypeStruct((B_pad, D_pad), jnp.float32),
        grid_spec=pltpu.PrefetchScalarGridSpec(
            num_scalar_prefetch=0,
            grid=(n_btiles, n_ltiles),
            in_specs=[
                pl.BlockSpec((block_b, D_pad), lambda i, l: (i, 0)),          # x
                pl.BlockSpec((layers_per_step, D_pad, D_pad),
                             lambda i, l: (l, 0, 0)),                         # W
                pl.BlockSpec((layers_per_step, 1, D_pad),
                             lambda i, l: (l, 0, 0)),                         # b
            ],
            out_specs=pl.BlockSpec((block_b, D_pad), lambda i, l: (i, 0)),
            scratch_shapes=[pltpu.VMEM((block_b, D_pad), ew_dtype)],
        ),
        compiler_params=pltpu.CompilerParams(
            dimension_semantics=("parallel", "arbitrary"),
            vmem_limit_bytes=vmem_limit),
        cost_estimate=cost,
    )(x, params.w, params.b)

    return out[:B, :params.dim]


if __name__ == "__main__":
    key = jax.random.PRNGKey(0)

    def make_case(k, B, dim, depth, w_scale=0.05, b_scale=0.01):
        ks = jax.random.split(k, 2 * depth + 1)
        x = jax.random.normal(ks[0], (B, dim), jnp.float32)
        ws = [w_scale * jax.random.normal(ks[1 + 2 * i], (dim, dim), jnp.float32)
              for i in range(depth)]
        bs = [b_scale * jax.random.normal(ks[2 + 2 * i], (dim,), jnp.float32)
              for i in range(depth)]
        return x, ws, bs

    def reference(x, ws, bs, neg_slope=0.2, eps=1e-12):
        n = jnp.sqrt(jnp.sum(x * x, axis=1, keepdims=True))
        h = x / jnp.maximum(n, eps)
        for w, b in zip(ws, bs):
            y = h @ w.T + b
            h = jnp.where(y >= 0, y, neg_slope * y)
        return h

    cases = [
        ("resident",    dict(B=8, dim=128, depth=4), {}),
        ("streamed",    dict(B=8, dim=128, depth=4),
         dict(weight_vmem_budget_bytes=0)),
        ("lane-padded", dict(B=4, dim=96,  depth=2), {}),
    ]
    for ck, (name, shp, fwd_kwargs) in zip(jax.random.split(key, len(cases)),
                                           cases):
        x, ws, bs = make_case(ck, **shp)
        params = prepare_style_network_params(ws, bs)   # hoisted, once
        out = style_network_forward(x, params, frac_gradient=0.1, **fwd_kwargs)
        jax.block_until_ready(out)
        ref = reference(x, ws, bs)
        assert out.shape == ref.shape, (name, out.shape, ref.shape)
        assert bool(jnp.all(jnp.isfinite(out))), name
        err = float(jnp.max(jnp.abs(out - ref)))
        assert err < 5e-2, (name, err)   # loose: bf16 MXU/VPU path

    print("KERNEL_OK")
</pallas_src>

<mosaic_0001>
module attributes {stable_mosaic.version = 11 : i64} {
  func.func @_style_network_kernel(%arg0: i32, %arg1: i32, %arg2: memref<8x128xf32, #tpu.memory_space<vmem>>, %arg3: memref<4x128x128xbf16, #tpu.memory_space<vmem>>, %arg4: memref<4x1x128xbf16, #tpu.memory_space<vmem>>, %arg5: memref<8x128xf32, #tpu.memory_space<vmem>>, %arg6: memref<8x128xbf16, #tpu.memory_space<vmem>>) attributes {dimension_semantics = [#tpu.dimension_semantics<parallel>, #tpu.dimension_semantics<arbitrary>], iteration_bounds = array<i64: 1, 1>, scalar_prefetch = 0 : i64, scratch_operands = 1 : i64, tpu.core_type = #tpu.core_type<tc>, window_params = [{transform_indices = @transform_0, window_bounds = array<i64: 8, 128>}, {transform_indices = @transform_1, window_bounds = array<i64: 4, 128, 128>}, {transform_indices = @transform_2, window_bounds = array<i64: 4, 1, 128>}, {transform_indices = @transform_3, window_bounds = array<i64: 8, 128>}]} {
    %c0_i32 = arith.constant 0 : i32
    %0 = arith.cmpi eq, %arg1, %c0_i32 : i32
    %1 = arith.extui %0 : i1 to i32
    %c0_i32_0 = arith.constant 0 : i32
    %2 = arith.cmpi ne, %1, %c0_i32_0 : i32
    scf.if %2 {
      %c0_38 = arith.constant 0 : index
      %c0_39 = arith.constant 0 : index
      %60 = vector.load %arg2[%c0_38, %c0_39] : memref<8x128xf32, #tpu.memory_space<vmem>>, vector<8x128xf32>
      %61 = arith.mulf %60, %60 : vector<8x128xf32>
      %cst_40 = arith.constant dense<0.000000e+00> : vector<8xf32>
      %62 = vector.multi_reduction <add>, %61, %cst_40 [1] : vector<8x128xf32> to vector<8xf32>
      %63 = vector.shape_cast %62 : vector<8xf32> to vector<8x1xf32>
      %cst_41 = arith.constant 1.000000e-24 : f32
      %64 = vector.broadcast %cst_41 : f32 to vector<8x1xf32>
      %65 = arith.maximumf %63, %64 : vector<8x1xf32>
      %66 = math.rsqrt %65 : vector<8x1xf32>
      %67 = vector.broadcast %66 : vector<8x1xf32> to vector<8x128xf32>
      %68 = arith.mulf %60, %67 : vector<8x128xf32>
      %69 = arith.truncf %68 : vector<8x128xf32> to vector<8x128xbf16>
      %c0_42 = arith.constant 0 : index
      %c0_43 = arith.constant 0 : index
      %70 = vector.load %arg6[%c0_42, %c0_43] : memref<8x128xbf16, #tpu.memory_space<vmem>>, vector<8x128xbf16>
      tpu.vector_store %arg6[%c0_42, %c0_43], %69 {strides = array<i32>} : memref<8x128xbf16, #tpu.memory_space<vmem>>, vector<8x128xbf16>,
    } else {
    }
    %c0 = arith.constant 0 : index
    %c0_1 = arith.constant 0 : index
    %3 = vector.load %arg6[%c0, %c0_1] : memref<8x128xbf16, #tpu.memory_space<vmem>>, vector<8x128xbf16>
    %c0_2 = arith.constant 0 : index
    %c0_3 = arith.constant 0 : index
    %c0_4 = arith.constant 0 : index
    %4 = vector.load %arg3[%c0_2, %c0_3, %c0_4] : memref<4x128x128xbf16, #tpu.memory_space<vmem>>, vector<1x128x128xbf16>
    %5 = vector.shape_cast %4 : vector<1x128x128xbf16> to vector<128x128xbf16>
    %cst = arith.constant dense<0.000000e+00> : vector<8x128xf32>
    %6 = tpu.matmul %3, %5, %cst {dimension_numbers = #tpu.dot_dimension_numbers<[1], [0], [0], [1], [0, 0, 1, 1], [], []>} : vector<8x128xbf16>, vector<128x128xbf16>, vector<8x128xf32> -> vector<8x128xf32>
    %7 = arith.truncf %6 : vector<8x128xf32> to vector<8x128xbf16>
    %c0_5 = arith.constant 0 : index
    %c0_6 = arith.constant 0 : index
    %c0_7 = arith.constant 0 : index
    %8 = vector.load %arg4[%c0_5, %c0_6, %c0_7] : memref<4x1x128xbf16, #tpu.memory_space<vmem>>, vector<1x1x128xbf16>
    %9 = vector.shape_cast %8 : vector<1x1x128xbf16> to vector<1x128xbf16>
    %10 = vector.broadcast %9 : vector<1x128xbf16> to vector<8x128xbf16>
    %11 = arith.addf %7, %10 : vector<8x128xbf16>
    %cst_8 = arith.constant 0.000000e+00 : bf16
    %12 = vector.broadcast %cst_8 : bf16 to vector<8x128xbf16>
    %13 = arith.cmpf oge, %11, %12 : vector<8x128xbf16>
    %cst_9 = arith.constant 2.001950e-01 : bf16
    %14 = vector.broadcast %cst_9 : bf16 to vector<8x128xbf16>
    %15 = arith.mulf %14, %11 : vector<8x128xbf16>
    %16 = arith.select %13, %11, %15 : vector<8x128xi1>, vector<8x128xbf16>
    %c1 = arith.constant 1 : index
    %c0_10 = arith.constant 0 : index
    %c0_11 = arith.constant 0 : index
    %17 = vector.load %arg3[%c1, %c0_10, %c0_11] : memref<4x128x128xbf16, #tpu.memory_space<vmem>>, vector<1x128x128xbf16>
    %18 = vector.shape_cast %17 : vector<1x128x128xbf16> to vector<128x128xbf16>
    %cst_12 = arith.constant dense<0.000000e+00> : vector<8x128xf32>
    %19 = tpu.matmul %16, %18, %cst_12 {dimension_numbers = #tpu.dot_dimension_numbers<[1], [0], [0], [1], [0, 0, 1, 1], [], []>} : vector<8x128xbf16>, vector<128x128xbf16>, vector<8x128xf32> -> vector<8x128xf32>
    %20 = arith.truncf %19 : vector<8x128xf32> to vector<8x128xbf16>
    %c1_13 = arith.constant 1 : index
    %c0_14 = arith.constant 0 : index
    %c0_15 = arith.constant 0 : index
    %21 = vector.load %arg4[%c1_13, %c0_14, %c0_15] : memref<4x1x128xbf16, #tpu.memory_space<vmem>>, vector<1x1x128xbf16>
    %22 = vector.shape_cast %21 : vector<1x1x128xbf16> to vector<1x128xbf16>
    %23 = vector.broadcast %22 : vector<1x128xbf16> to vector<8x128xbf16>
    %24 = arith.addf %20, %23 : vector<8x128xbf16>
    %cst_16 = arith.constant 0.000000e+00 : bf16
    %25 = vector.broadcast %cst_16 : bf16 to vector<8x128xbf16>
    %26 = arith.cmpf oge, %24, %25 : vector<8x128xbf16>
    %cst_17 = arith.constant 2.001950e-01 : bf16
    %27 = vector.broadcast %cst_17 : bf16 to vector<8x128xbf16>
    %28 = arith.mulf %27, %24 : vector<8x128xbf16>
    %29 = arith.select %26, %24, %28 : vector<8x128xi1>, vector<8x128xbf16>
    %c2 = arith.constant 2 : index
    %c0_18 = arith.constant 0 : index
    %c0_19 = arith.constant 0 : index
    %30 = vector.load %arg3[%c2, %c0_18, %c0_19] : memref<4x128x128xbf16, #tpu.memory_space<vmem>>, vector<1x128x128xbf16>
    %31 = vector.shape_cast %30 : vector<1x128x128xbf16> to vector<128x128xbf16>
    %cst_20 = arith.constant dense<0.000000e+00> : vector<8x128xf32>
    %32 = tpu.matmul %29, %31, %cst_20 {dimension_numbers = #tpu.dot_dimension_numbers<[1], [0], [0], [1], [0, 0, 1, 1], [], []>} : vector<8x128xbf16>, vector<128x128xbf16>, vector<8x128xf32> -> vector<8x128xf32>
    %33 = arith.truncf %32 : vector<8x128xf32> to vector<8x128xbf16>
    %c2_21 = arith.constant 2 : index
    %c0_22 = arith.constant 0 : index
    %c0_23 = arith.constant 0 : index
    %34 = vector.load %arg4[%c2_21, %c0_22, %c0_23] : memref<4x1x128xbf16, #tpu.memory_space<vmem>>, vector<1x1x128xbf16>
    %35 = vector.shape_cast %34 : vector<1x1x128xbf16> to vector<1x128xbf16>
    %36 = vector.broadcast %35 : vector<1x128xbf16> to vector<8x128xbf16>
    %37 = arith.addf %33, %36 : vector<8x128xbf16>
    %cst_24 = arith.constant 0.000000e+00 : bf16
    %38 = vector.broadcast %cst_24 : bf16 to vector<8x128xbf16>
    %39 = arith.cmpf oge, %37, %38 : vector<8x128xbf16>
    %cst_25 = arith.constant 2.001950e-01 : bf16
    %40 = vector.broadcast %cst_25 : bf16 to vector<8x128xbf16>
    %41 = arith.mulf %40, %37 : vector<8x128xbf16>
    %42 = arith.select %39, %37, %41 : vector<8x128xi1>, vector<8x128xbf16>
    %c3 = arith.constant 3 : index
    %c0_26 = arith.constant 0 : index
    %c0_27 = arith.constant 0 : index
    %43 = vector.load %arg3[%c3, %c0_26, %c0_27] : memref<4x128x128xbf16, #tpu.memory_space<vmem>>, vector<1x128x128xbf16>
    %44 = vector.shape_cast %43 : vector<1x128x128xbf16> to vector<128x128xbf16>
    %cst_28 = arith.constant dense<0.000000e+00> : vector<8x128xf32>
    %45 = tpu.matmul %42, %44, %cst_28 {dimension_numbers = #tpu.dot_dimension_numbers<[1], [0], [0], [1], [0, 0, 1, 1], [], []>} : vector<8x128xbf16>, vector<128x128xbf16>, vector<8x128xf32> -> vector<8x128xf32>
    %46 = arith.truncf %45 : vector<8x128xf32> to vector<8x128xbf16>
    %c3_29 = arith.constant 3 : index
    %c0_30 = arith.constant 0 : index
    %c0_31 = arith.constant 0 : index
    %47 = vector.load %arg4[%c3_29, %c0_30, %c0_31] : memref<4x1x128xbf16, #tpu.memory_space<vmem>>, vector<1x1x128xbf16>
    %48 = vector.shape_cast %47 : vector<1x1x128xbf16> to vector<1x128xbf16>
    %49 = vector.broadcast %48 : vector<1x128xbf16> to vector<8x128xbf16>
    %50 = arith.addf %46, %49 : vector<8x128xbf16>
    %cst_32 = arith.constant 0.000000e+00 : bf16
    %51 = vector.broadcast %cst_32 : bf16 to vector<8x128xbf16>
    %52 = arith.cmpf oge, %50, %51 : vector<8x128xbf16>
    %cst_33 = arith.constant 2.001950e-01 : bf16
    %53 = vector.broadcast %cst_33 : bf16 to vector<8x128xbf16>
    %54 = arith.mulf %53, %50 : vector<8x128xbf16>
    %55 = arith.select %52, %50, %54 : vector<8x128xi1>, vector<8x128xbf16>
    %c0_34 = arith.constant 0 : index
    %c0_35 = arith.constant 0 : index
    %56 = vector.load %arg6[%c0_34, %c0_35] : memref<8x128xbf16, #tpu.memory_space<vmem>>, vector<8x128xbf16>
    tpu.vector_store %arg6[%c0_34, %c0_35], %55 {strides = array<i32>} : memref<8x128xbf16, #tpu.memory_space<vmem>>, vector<8x128xbf16>,
    %c0_i32_36 = arith.constant 0 : i32
    %57 = arith.cmpi eq, %arg1, %c0_i32_36 : i32
    %58 = arith.extui %57 : i1 to i32
    %c0_i32_37 = arith.constant 0 : i32
    %59 = arith.cmpi ne, %58, %c0_i32_37 : i32
    scf.if %59 {
      %60 = arith.extf %55 : vector<8x128xbf16> to vector<8x128xf32>
      %c0_38 = arith.constant 0 : index
      %c0_39 = arith.constant 0 : index
      %61 = vector.load %arg5[%c0_38, %c0_39] : memref<8x128xf32, #tpu.memory_space<vmem>>, vector<8x128xf32>
      tpu.vector_store %arg5[%c0_38, %c0_39], %60 {strides = array<i32>} : memref<8x128xf32, #tpu.memory_space<vmem>>, vector<8x128xf32>,
    } else {
    }
    return
  }
  func.func @transform_0(%arg0: i32, %arg1: i32) -> (i32, i32) {
    %c0_i32 = arith.constant 0 : i32
    %c0_i32_0 = arith.constant 0 : i32
    return %arg0, %c0_i32 : i32, i32
  }
  func.func @transform_1(%arg0: i32, %arg1: i32) -> (i32, i32, i32) {
    %c0_i32 = arith.constant 0 : i32
    %c0_i32_0 = arith.constant 0 : i32
    %c0_i32_1 = arith.constant 0 : i32
    return %arg1, %c0_i32, %c0_i32_0 : i32, i32, i32
  }
  func.func @transform_2(%arg0: i32, %arg1: i32) -> (i32, i32, i32) {
    %c0_i32 = arith.constant 0 : i32
    %c0_i32_0 = arith.constant 0 : i32
    %c0_i32_1 = arith.constant 0 : i32
    return %arg1, %c0_i32, %c0_i32_0 : i32, i32, i32
  }
  func.func @transform_3(%arg0: i32, %arg1: i32) -> (i32, i32) {
    %c0_i32 = arith.constant 0 : i32
    %c0_i32_0 = arith.constant 0 : i32
    return %arg0, %c0_i32 : i32, i32
  }
}

</mosaic_0001>

<llo_original>
// kernel: tpu_custom_call.1
$region0: #{tpu_custom_call.1}
  #allocation0 [shape = 'u32[]', space=smem, size = 0x4, offset = 0x4, fixed_abs, tag = 'smem constant byte address 0x4 - core index']
  #allocation1 [shape = 'u32[72,128]{1,0:T(1,128)}', space=vmem, size = 0x9000, scoped, tag = 'internal scratch']
  #allocation2 [shape = 'bf16[8,128]{1,0:T(8,128)(2,1)}', space=vmem, size = 0x800, scoped, tag = 'scratch operand']
  %s0 = inlined_call_operand.hbm [shape: f32[8,128], index: 0, kind: input, shape index: {}]
  %s1 = inlined_call_operand.hbm [shape: bf16[4,128,128], index: 1, kind: input, shape index: {}]
  %s2 = inlined_call_operand.vmem [shape: bf16[4,1,128], index: 2, kind: input, shape index: {}]
  %s3 = inlined_call_operand.hbm [shape: f32[8,128], index: 3, kind: output, shape index: {}]
  %s4 = sld [smem:[#allocation0]]
  $region38: #{tpu_custom_call.1} parent=0
    _
  %s6 = ssub.s32 1, %s4
  %s7 = scalar_select 0, %s6, %s4
  $region1: #{tpu_custom_call.1} parent=0
    #allocation3 [shape = 'u8[4096]{0}', space=vmem, size = 0x1000, scoped, tag = 'input window, operand 0, single buffered']
    #allocation4 [shape = 's32[1]{0}', space=sflag, size = 0x4, scoped, tag = 'scoped memory for tpu_custom_call.1']
    #allocation5 [shape = 's32[1]{0}', space=sflag, size = 0x4, scoped, tag = 'scoped memory for tpu_custom_call.1']
    #allocation6 [shape = 'u8[131072]{0}', space=vmem, size = 0x20000, scoped, tag = 'input window, operand 1, single buffered']
    #allocation7 [shape = 's32[1]{0}', space=sflag, size = 0x4, scoped, tag = 'scoped memory for tpu_custom_call.1']
    #allocation8 [shape = 'u8[4096]{0}', space=vmem, size = 0x1000, scoped, tag = 'output window, operand 0, single buffered']
    %8 = vsyncpa [#allocation4], 0
    %9 = vsyncpa [#allocation7], 0
    %10 = vsyncpa [#allocation5], 0
    // Predicated region
    $region2: #{tpu_custom_call.1} parent=1 // pred_check
      _
    $region3: #{tpu_custom_call.1} parent=1 // pred_check_branch
      %12 = sbr.rel (0) target = $region5
    $region4: #{tpu_custom_call.1} parent=1 // pred_region
      %14 = vsyncadd [#allocation4], 0
      %s16 = sshll.u32 %s0, 4
      %s17 = int_to_ptr.hbm [resolvable:$true] %s16
      %s18 = sshll.u32 [#allocation3], 4
      %s19 = int_to_ptr.vmem [resolvable:$true] %s18
      %21 = dma.hbm_to_vmem [thread:$0]  %s17, 128, %s19, [#allocation4]
    $region5: #{tpu_custom_call.1} parent=1 // pred_fallthru
      _
    // Predicated region
    $region6: #{tpu_custom_call.1} parent=1 // pred_check
      _
    $region7: #{tpu_custom_call.1} parent=1 // pred_check_branch
      %23 = sbr.rel (0) target = $region9
    $region8: #{tpu_custom_call.1} parent=1 // pred_region
      %25 = vsyncadd [#allocation7], 0
      %s26 = sshll.u32 %s1, 4
      %s27 = int_to_ptr.hbm [resolvable:$true] %s26
      %s28 = sshll.u32 [#allocation6], 4
      %s29 = int_to_ptr.vmem [resolvable:$true] %s28
      %34 = dma.hbm_to_vmem [thread:$0]  %s27, 4096, %s29, [#allocation7], 64, 64, 4
    $region9: #{tpu_custom_call.1} parent=1 // pred_fallthru
      _
    // Predicated region
    $region10: #{tpu_custom_call.1} parent=1 // pred_check
      _
    $region11: #{tpu_custom_call.1} parent=1 // pred_check_branch
      %36 = sbr.rel (0) target = $region13
    $region12: #{tpu_custom_call.1} parent=1 // pred_region
      _
    $region13: #{tpu_custom_call.1} parent=1 // pred_fallthru
      _
    // Predicated region
    $region14: #{tpu_custom_call.1} parent=1 // pred_check
      _
    $region15: #{tpu_custom_call.1} parent=1 // pred_check_branch
      %38 = sbr.rel (0) target = $region17
    $region16: #{tpu_custom_call.1} parent=1 // pred_region
      %40 = dma.done [#allocation4], 128
    $region17: #{tpu_custom_call.1} parent=1 // pred_fallthru
      _
    // Predicated region
    $region18: #{tpu_custom_call.1} parent=1 // pred_check
      _
    $region19: #{tpu_custom_call.1} parent=1 // pred_check_branch
      %42 = sbr.rel (0) target = $region21
    $region20: #{tpu_custom_call.1} parent=1 // pred_region
      %44 = dma.done [#allocation7], 4096
    $region21: #{tpu_custom_call.1} parent=1 // pred_fallthru
      _
    %p45 = scmp.eq.s32.totalorder 0, 0
    // Predicated region
    $region22: #{tpu_custom_call.1} parent=1 // pred_check
      %p46 = pneg %p45
    $region23: #{tpu_custom_call.1} parent=1 // pred_check_branch
      %48 = sbr.rel (%p46) target = $region25
    $region24: #{tpu_custom_call.1} parent=1 // pred_region
      %v49 = vld [vmem:[#allocation3] sm:$0xff]
      %v50 = vmul.f32 %v49, %v49
      %51 = vadd.xlane.f32.xlu0 %v50
      %v52 = vpop.xlane.xlu0 %51
      %v53 = vmax.f32 %v52, 1e-24
      %v54 = vrsqrt.pop %v53
      %v55 = vmul.f32 %v54, %v53
      %v56 = vmul.f32 %v55, %v54
      %v57 = vmul.f32 0.5, %v56
      %v58 = vsub.f32 1.5, %v57
      %v59 = vmul.f32 %v54, %v58
      %vm60 = vweird.f32 %v53
      %vm61 = vweird.f32 %v54
      %vm62 = vmor %vm60, %vm61
      %v63 = vsel %vm62, %v54, %v59
      %v64 = vmul.f32 %v49, %v63
      %v65 = vpack.c.bf16 %v64, %v64
      %66 = vst [vmem:[#allocation2] sm:$0xf] %v65
    $region25: #{tpu_custom_call.1} parent=1 // pred_fallthru
      _
    %v67 = vld [vmem:[#allocation2] sm:$0xf]
    %v68 = vld [vmem:[#allocation6] sm:$0xf]
    %v69 = vld [vmem:[#allocation6 + $0x4] sm:$0xf]
    %v70 = vld [vmem:[#allocation6 + $0x8] sm:$0xf]
    %v71 = vld [vmem:[#allocation6 + $0xc] sm:$0xf]
    %v72 = vld [vmem:[#allocation6 + $0x10] sm:$0xf]
    %v73 = vld [vmem:[#allocation6 + $0x14] sm:$0xf]
    %v74 = vld [vmem:[#allocation6 + $0x18] sm:$0xf]
    %v75 = vld [vmem:[#allocation6 + $0x1c] sm:$0xf]
    %v76 = vld [vmem:[#allocation6 + $0x20] sm:$0xf]
    %v77 = vld [vmem:[#allocation6 + $0x24] sm:$0xf]
    %v78 = vld [vmem:[#allocation6 + $0x28] sm:$0xf]
    %v79 = vld [vmem:[#allocation6 + $0x2c] sm:$0xf]
    %v80 = vld [vmem:[#allocation6 + $0x30] sm:$0xf]
    %v81 = vld [vmem:[#allocation6 + $0x34] sm:$0xf]
    %v82 = vld [vmem:[#allocation6 + $0x38] sm:$0xf]
    %v83 = vld [vmem:[#allocation6 + $0x3c] sm:$0xf]
    %v100 = vunpack.c.l.b16 %v68
    %v101 = vunpack.c.l.b16 %v69
    %v102 = vunpack.c.l.b16 %v70
    %v103 = vunpack.c.l.b16 %v71
    %v104 = vunpack.c.l.b16 %v72
    %v105 = vunpack.c.l.b16 %v73
    %v106 = vunpack.c.l.b16 %v74
    %v107 = vunpack.c.l.b16 %v75
    %v108 = vunpack.c.l.b16 %v76
    %v109 = vunpack.c.l.b16 %v77
    %v110 = vunpack.c.l.b16 %v78
    %v111 = vunpack.c.l.b16 %v79
    %v112 = vunpack.c.l.b16 %v80
    %v113 = vunpack.c.l.b16 %v81
    %v114 = vunpack.c.l.b16 %v82
    %v115 = vunpack.c.l.b16 %v83
    %v116 = vpack.c.b16 %v101, %v100
    %v117 = vpack.c.b16 %v103, %v102
    %v118 = vpack.c.b16 %v105, %v104
    %v119 = vpack.c.b16 %v107, %v106
    %v120 = vpack.c.b16 %v109, %v108
    %v121 = vpack.c.b16 %v111, %v110
    %v122 = vpack.c.b16 %v113, %v112
    %v123 = vpack.c.b16 %v115, %v114
    %132 = vmatpush.bf16.msra.mxu0 %v123
    %133 = vmatpush.bf16.msra.mxu0 %v122
    %134 = vmatpush.bf16.msra.mxu0 %v121
    %135 = vmatpush.bf16.msra.mxu0 %v120
    %136 = vmatpush.bf16.msra.mxu0 %v119
    %137 = vmatpush.bf16.msra.mxu0 %v118
    %138 = vmatpush.bf16.msra.mxu0 %v117
    %139 = vmatpush.bf16.msra.mxu0 %v116
    %140 = vmatmul.bf16.gmra.mxu0 %v67
    %v141 = vpop.f32.mrf.mxu0
    %v142 = vadd.f32 0.0, %v141
    %v143 = vpop.f32.mrf.mxu0
    %144 = vdwg.mxu0
    %v145 = vpack.c.bf16 %v142, %v142
    %v146 = vld [vmem:[%s2] sm:$0x1]
    %v148 = vpack.i.b16 %v146, %v146
    %v150 = vperm.slane %v148, 0
    %v151 = vunpack.c.l.bf16 %v145
    %v152 = vunpack.c.l.bf16 %v150
    %v153 = vadd.f32 %v151, %v152
    %v154 = vpack.c.bf16 %v153, %v153
    %v155 = vunpack.c.l.bf16 %v154
    %vm156 = vcmp.ge.f32.partialorder %v155, 0.0
    %v157 = vmul.f32 %v155, 0.20019531
    %v158 = vpack.c.bf16 %v157, %v157
    %vm159 = vmpackc.low %vm156, %vm156
    %v160 = vsel %vm159, %v154, %v158
    %s161 = scalar_lea.vmem [#allocation6], 64
    %v162 = vld [vmem:[%s161] sm:$0xf]
    %v163 = vld [vmem:[%s161 + $0x4] sm:$0xf]
    %v164 = vld [vmem:[%s161 + $0x8] sm:$0xf]
    %v165 = vld [vmem:[%s161 + $0xc] sm:$0xf]
    %v166 = vld [vmem:[%s161 + $0x10] sm:$0xf]
    %v167 = vld [vmem:[%s161 + $0x14] sm:$0xf]
    %v168 = vld [vmem:[%s161 + $0x18] sm:$0xf]
    %v169 = vld [vmem:[%s161 + $0x1c] sm:$0xf]
    %v170 = vld [vmem:[%s161 + $0x20] sm:$0xf]
    %v171 = vld [vmem:[%s161 + $0x24] sm:$0xf]
    %v172 = vld [vmem:[%s161 + $0x28] sm:$0xf]
    %v173 = vld [vmem:[%s161 + $0x2c] sm:$0xf]
    %v174 = vld [vmem:[%s161 + $0x30] sm:$0xf]
    %v175 = vld [vmem:[%s161 + $0x34] sm:$0xf]
    %v176 = vld [vmem:[%s161 + $0x38] sm:$0xf]
    %v177 = vld [vmem:[%s161 + $0x3c] sm:$0xf]
    %v194 = vunpack.c.l.b16 %v162
    %v195 = vunpack.c.l.b16 %v163
    %v196 = vunpack.c.l.b16 %v164
    %v197 = vunpack.c.l.b16 %v165
    %v198 = vunpack.c.l.b16 %v166
    %v199 = vunpack.c.l.b16 %v167
    %v200 = vunpack.c.l.b16 %v168
    %v201 = vunpack.c.l.b16 %v169
    %v202 = vunpack.c.l.b16 %v170
    %v203 = vunpack.c.l.b16 %v171
    %v204 = vunpack.c.l.b16 %v172
    %v205 = vunpack.c.l.b16 %v173
    %v206 = vunpack.c.l.b16 %v174
    %v207 = vunpack.c.l.b16 %v175
    %v208 = vunpack.c.l.b16 %v176
    %v209 = vunpack.c.l.b16 %v177
    %v210 = vpack.c.b16 %v195, %v194
    %v211 = vpack.c.b16 %v197, %v196
    %v212 = vpack.c.b16 %v199, %v198
    %v213 = vpack.c.b16 %v201, %v200
    %v214 = vpack.c.b16 %v203, %v202
    %v215 = vpack.c.b16 %v205, %v204
    %v216 = vpack.c.b16 %v207, %v206
    %v217 = vpack.c.b16 %v209, %v208
    %226 = vmatpush.bf16.msra.mxu0 %v217
    %227 = vmatpush.bf16.msra.mxu0 %v216
    %228 = vmatpush.bf16.msra.mxu0 %v215
    %229 = vmatpush.bf16.msra.mxu0 %v214
    %230 = vmatpush.bf16.msra.mxu0 %v213
    %231 = vmatpush.bf16.msra.mxu0 %v212
    %232 = vmatpush.bf16.msra.mxu0 %v211
    %233 = vmatpush.bf16.msra.mxu0 %v210
    %234 = vmatmul.bf16.gmra.mxu0 %v160
    %v235 = vpop.f32.mrf.mxu0
    %v236 = vadd.f32 0.0, %v235
    %v237 = vpop.f32.mrf.mxu0
    %238 = vdwg.mxu0
    %v239 = vpack.c.bf16 %v236, %v236
    %s240 = scalar_lea.vmem %s2, 1
    %v241 = vld [vmem:[%s240] sm:$0x1]
    %v243 = vpack.i.b16 %v241, %v241
    %v245 = vperm.slane %v243, 0
    %v246 = vunpack.c.l.bf16 %v239
    %v247 = vunpack.c.l.bf16 %v245
    %v248 = vadd.f32 %v246, %v247
    %v249 = vpack.c.bf16 %v248, %v248
    %v250 = vunpack.c.l.bf16 %v249
    %vm251 = vcmp.ge.f32.partialorder %v250, 0.0
    %v252 = vmul.f32 %v250, 0.20019531
    %v253 = vpack.c.bf16 %v252, %v252
    %vm254 = vmpackc.low %vm251, %vm251
    %v255 = vsel %vm254, %v249, %v253
    %s256 = scalar_lea.vmem [#allocation6], 128
    %v257 = vld [vmem:[%s256] sm:$0xf]
    %v258 = vld [vmem:[%s256 + $0x4] sm:$0xf]
    %v259 = vld [vmem:[%s256 + $0x8] sm:$0xf]
    %v260 = vld [vmem:[%s256 + $0xc] sm:$0xf]
    %v261 = vld [vmem:[%s256 + $0x10] sm:$0xf]
    %v262 = vld [vmem:[%s256 + $0x14] sm:$0xf]
    %v263 = vld [vmem:[%s256 + $0x18] sm:$0xf]
    %v264 = vld [vmem:[%s256 + $0x1c] sm:$0xf]
    %v265 = vld [vmem:[%s256 + $0x20] sm:$0xf]
    %v266 = vld [vmem:[%s256 + $0x24] sm:$0xf]
    %v267 = vld [vmem:[%s256 + $0x28] sm:$0xf]
    %v268 = vld [vmem:[%s256 + $0x2c] sm:$0xf]
    %v269 = vld [vmem:[%s256 + $0x30] sm:$0xf]
    %v270 = vld [vmem:[%s256 + $0x34] sm:$0xf]
    %v271 = vld [vmem:[%s256 + $0x38] sm:$0xf]
    %v272 = vld [vmem:[%s256 + $0x3c] sm:$0xf]
    %v289 = vunpack.c.l.b16 %v257
    %v290 = vunpack.c.l.b16 %v258
    %v291 = vunpack.c.l.b16 %v259
    %v292 = vunpack.c.l.b16 %v260
    %v293 = vunpack.c.l.b16 %v261
    %v294 = vunpack.c.l.b16 %v262
    %v295 = vunpack.c.l.b16 %v263
    %v296 = vunpack.c.l.b16 %v264
    %v297 = vunpack.c.l.b16 %v265
    %v298 = vunpack.c.l.b16 %v266
    %v299 = vunpack.c.l.b16 %v267
    %v300 = vunpack.c.l.b16 %v268
    %v301 = vunpack.c.l.b16 %v269
    %v302 = vunpack.c.l.b16 %v270
    %v303 = vunpack.c.l.b16 %v271
    %v304 = vunpack.c.l.b16 %v272
    %v305 = vpack.c.b16 %v290, %v289
    %v306 = vpack.c.b16 %v292, %v291
    %v307 = vpack.c.b16 %v294, %v293
    %v308 = vpack.c.b16 %v296, %v295
    %v309 = vpack.c.b16 %v298, %v297
    %v310 = vpack.c.b16 %v300, %v299
    %v311 = vpack.c.b16 %v302, %v301
    %v312 = vpack.c.b16 %v304, %v303
    %321 = vmatpush.bf16.msra.mxu0 %v312
    %322 = vmatpush.bf16.msra.mxu0 %v311
    %323 = vmatpush.bf16.msra.mxu0 %v310
    %324 = vmatpush.bf16.msra.mxu0 %v309
    %325 = vmatpush.bf16.msra.mxu0 %v308
    %326 = vmatpush.bf16.msra.mxu0 %v307
    %327 = vmatpush.bf16.msra.mxu0 %v306
    %328 = vmatpush.bf16.msra.mxu0 %v305
    %329 = vmatmul.bf16.gmra.mxu0 %v255
    %v330 = vpop.f32.mrf.mxu0
    %v331 = vadd.f32 0.0, %v330
    %v332 = vpop.f32.mrf.mxu0
    %333 = vdwg.mxu0
    %v334 = vpack.c.bf16 %v331, %v331
    %s335 = scalar_lea.vmem %s2, 2
    %v336 = vld [vmem:[%s335] sm:$0x1]
    %v338 = vpack.i.b16 %v336, %v336
    %v340 = vperm.slane %v338, 0
    %v341 = vunpack.c.l.bf16 %v334
    %v342 = vunpack.c.l.bf16 %v340
    %v343 = vadd.f32 %v341, %v342
    %v344 = vpack.c.bf16 %v343, %v343
    %v345 = vunpack.c.l.bf16 %v344
    %vm346 = vcmp.ge.f32.partialorder %v345, 0.0
    %v347 = vmul.f32 %v345, 0.20019531
    %v348 = vpack.c.bf16 %v347, %v347
    %vm349 = vmpackc.low %vm346, %vm346
    %v350 = vsel %vm349, %v344, %v348
    %s351 = scalar_lea.vmem [#allocation6], 192
    %v352 = vld [vmem:[%s351] sm:$0xf]
    %v353 = vld [vmem:[%s351 + $0x4] sm:$0xf]
    %v354 = vld [vmem:[%s351 + $0x8] sm:$0xf]
    %v355 = vld [vmem:[%s351 + $0xc] sm:$0xf]
    %v356 = vld [vmem:[%s351 + $0x10] sm:$0xf]
    %v357 = vld [vmem:[%s351 + $0x14] sm:$0xf]
    %v358 = vld [vmem:[%s351 + $0x18] sm:$0xf]
    %v359 = vld [vmem:[%s351 + $0x1c] sm:$0xf]
    %v360 = vld [vmem:[%s351 + $0x20] sm:$0xf]
    %v361 = vld [vmem:[%s351 + $0x24] sm:$0xf]
    %v362 = vld [vmem:[%s351 + $0x28] sm:$0xf]
    %v363 = vld [vmem:[%s351 + $0x2c] sm:$0xf]
    %v364 = vld [vmem:[%s351 + $0x30] sm:$0xf]
    %v365 = vld [vmem:[%s351 + $0x34] sm:$0xf]
    %v366 = vld [vmem:[%s351 + $0x38] sm:$0xf]
    %v367 = vld [vmem:[%s351 + $0x3c] sm:$0xf]
    %v384 = vunpack.c.l.b16 %v352
    %v385 = vunpack.c.l.b16 %v353
    %v386 = vunpack.c.l.b16 %v354
    %v387 = vunpack.c.l.b16 %v355
    %v388 = vunpack.c.l.b16 %v356
    %v389 = vunpack.c.l.b16 %v357
    %v390 = vunpack.c.l.b16 %v358
    %v391 = vunpack.c.l.b16 %v359
    %v392 = vunpack.c.l.b16 %v360
    %v393 = vunpack.c.l.b16 %v361
    %v394 = vunpack.c.l.b16 %v362
    %v395 = vunpack.c.l.b16 %v363
    %v396 = vunpack.c.l.b16 %v364
    %v397 = vunpack.c.l.b16 %v365
    %v398 = vunpack.c.l.b16 %v366
    %v399 = vunpack.c.l.b16 %v367
    %v400 = vpack.c.b16 %v385, %v384
    %v401 = vpack.c.b16 %v387, %v386
    %v402 = vpack.c.b16 %v389, %v388
    %v403 = vpack.c.b16 %v391, %v390
    %v404 = vpack.c.b16 %v393, %v392
    %v405 = vpack.c.b16 %v395, %v394
    %v406 = vpack.c.b16 %v397, %v396
    %v407 = vpack.c.b16 %v399, %v398
    %416 = vmatpush.bf16.msra.mxu0 %v407
    %417 = vmatpush.bf16.msra.mxu0 %v406
    %418 = vmatpush.bf16.msra.mxu0 %v405
    %419 = vmatpush.bf16.msra.mxu0 %v404
    %420 = vmatpush.bf16.msra.mxu0 %v403
    %421 = vmatpush.bf16.msra.mxu0 %v402
    %422 = vmatpush.bf16.msra.mxu0 %v401
    %423 = vmatpush.bf16.msra.mxu0 %v400
    %424 = vmatmul.bf16.gmra.mxu0 %v350
    %v425 = vpop.f32.mrf.mxu0
    %v426 = vadd.f32 0.0, %v425
    %v427 = vpop.f32.mrf.mxu0
    %428 = vdwg.mxu0
    %v429 = vpack.c.bf16 %v426, %v426
    %s430 = scalar_lea.vmem %s2, 3
    %v431 = vld [vmem:[%s430] sm:$0x1]
    %v433 = vpack.i.b16 %v431, %v431
    %v435 = vperm.slane %v433, 0
    %v436 = vunpack.c.l.bf16 %v429
    %v437 = vunpack.c.l.bf16 %v435
    %v438 = vadd.f32 %v436, %v437
    %v439 = vpack.c.bf16 %v438, %v438
    %v440 = vunpack.c.l.bf16 %v439
    %vm441 = vcmp.ge.f32.partialorder %v440, 0.0
    %v442 = vmul.f32 %v440, 0.20019531
    %v443 = vpack.c.bf16 %v442, %v442
    %vm444 = vmpackc.low %vm441, %vm441
    %v445 = vsel %vm444, %v439, %v443
    %446 = vst [vmem:[#allocation2] sm:$0xf] %v445
    // Predicated region
    $region26: #{tpu_custom_call.1} parent=1 // pred_check
      %p447 = pneg %p45
    $region27: #{tpu_custom_call.1} parent=1 // pred_check_branch
      %449 = sbr.rel (%p447) target = $region29
    $region28: #{tpu_custom_call.1} parent=1 // pred_region
      %v450 = vunpack.c.l.bf16 %v445
      %451 = vst [vmem:[#allocation8] sm:$0xff] %v450
    $region29: #{tpu_custom_call.1} parent=1 // pred_fallthru
      _
    // Predicated region
    $region30: #{tpu_custom_call.1} parent=1 // pred_check
      _
    $region31: #{tpu_custom_call.1} parent=1 // pred_check_branch
      %453 = sbr.rel (0) target = $region33
    $region32: #{tpu_custom_call.1} parent=1 // pred_region
      %455 = vsyncadd [#allocation5], 0
      %s457 = sshll.u32 [#allocation8], 4
      %s458 = int_to_ptr.vmem [resolvable:$true] %s457
      %s459 = sshll.u32 %s3, 4
      %s460 = int_to_ptr.hbm [resolvable:$true] %s459
      %462 = dma.vmem_to_hbm [thread:$0]  %s458, 128, %s460, [#allocation5]
    $region33: #{tpu_custom_call.1} parent=1 // pred_fallthru
      _
    // Predicated region
    $region34: #{tpu_custom_call.1} parent=1 // pred_check
      _
    $region35: #{tpu_custom_call.1} parent=1 // pred_check_branch
      %464 = sbr.rel (0) target = $region37
    $region36: #{tpu_custom_call.1} parent=1 // pred_region
      %466 = dma.done [#allocation5], 128
    $region37: #{tpu_custom_call.1} parent=1 // pred_fallthru
      _
    %467 = vsyncpa [#allocation4], 1
    %468 = vsyncpa [#allocation7], 1
    %469 = vsyncpa [#allocation5], 1

</llo_original>
